<compile_context>
chip_gen: v5e
topology: v5e:2x2
jax: 0.10.0
libtpu: 0.0.40
codegen_flags: <defaults>
</compile_context>

<pallas_src>
import functools

import jax
import jax.numpy as jnp
from jax import lax
from jax.experimental import pallas as pl
from jax.experimental.pallas import tpu as pltpu

K = 11   # avg_pool2d kernel size
P = 5    # avg_pool2d padding


def _banded_f32(n):
    """n x n 0/1 matrix with ones where |i - j| <= P, built from 2-D iotas.

    Multiplying by this matrix computes the zero-padded ('same') sliding-window
    sum along the contracted axis.
    """
    row = lax.broadcasted_iota(jnp.int32, (n, n), 0)
    col = lax.broadcasted_iota(jnp.int32, (n, n), 1)
    return (jnp.abs(row - col) <= P).astype(jnp.float32)


def _color_map_loss_kernel(x1_ref, x2_ref, out_ref, *, C, H, W):
    """x*_ref: (1, C, H, W) blocks; out_ref: (1, 1, 128) per-batch partial sum."""
    bw = _banded_f32(W)   # (W, W): W-axis window sum via  x @ bw
    bh = _banded_f32(H)   # (H, H): H-axis window sum via  bh @ x

    def box_sums(x_ref):
        x = x_ref[0].astype(jnp.float32)                     # (C, H, W)
        if H % 8 == 0:
            # Single MXU matmul for the W-axis pass over all channels at once.
            t2d = jnp.dot(x.reshape(C * H, W), bw,
                          preferred_element_type=jnp.float32)  # (C*H, W)
            t_list = [t2d[c * H:(c + 1) * H, :] for c in range(C)]
        else:
            t_list = [jnp.dot(x[c], bw, preferred_element_type=jnp.float32)
                      for c in range(C)]
        # H-axis pass: per-channel (H,H)@(H,W) matmuls (C small, unrolled).
        return [jnp.dot(bh, tc, preferred_element_type=jnp.float32)
                for tc in t_list]

    b1 = box_sums(x1_ref)
    b2 = box_sums(x2_ref)

    # Channel sums (C-1 adds on (H, W) tiles).
    csum1 = b1[0]
    csum2 = b2[0]
    for c in range(1, C):
        csum1 = csum1 + b1[c]
        csum2 = csum2 + b2[c]

    # One reciprocal per image on (H, W); the 1/121 pooling factor cancels in
    # box_c / sum_c(box_c), so it is never applied.
    inv1 = 1.0 / csum1
    inv2 = 1.0 / csum2

    # Streamed squared-difference accumulation (never materialize full color maps).
    acc = None
    for c in range(C):
        d = b1[c] * inv1 - b2[c] * inv2
        acc = d * d if acc is None else acc + d * d

    # Per-batch partial sum of squared differences, lane-dense output block.
    out_ref[...] = jnp.broadcast_to(jnp.sum(acc), (1, 1, 128))


def color_map_loss(image1, image2):
    """Pallas implementation of ColorMapLoss.forward. Inputs: (N, C, H, W)."""
    assert image1.shape == image2.shape
    N, C, H, W = image1.shape

    kernel = functools.partial(_color_map_loss_kernel, C=C, H=H, W=W)
    # TODO(synk): for large H/W (per-image working set beyond a few MiB), tile the
    # H axis with a haloed block and bump vmem_limit_bytes per TPU generation.
    partial = pl.pallas_call(
        kernel,
        out_shape=jax.ShapeDtypeStruct((N, 1, 128), jnp.float32),
        grid=(N,),
        in_specs=[
            pl.BlockSpec((1, C, H, W), lambda n: (n, 0, 0, 0)),
            pl.BlockSpec((1, C, H, W), lambda n: (n, 0, 0, 0)),
        ],
        out_specs=pl.BlockSpec((1, 1, 128), lambda n: (n, 0, 0)),
        compiler_params=pltpu.CompilerParams(
            dimension_semantics=("parallel",),
        ),
    )(image1, image2)

    # Tiny final reduction over batch + MSE normalization.
    return jnp.sum(partial[:, 0, 0]) * (1.0 / float(N * C * H * W))


def _reference_loss(image1, image2):
    """Pure-JAX reference mirroring the PyTorch module."""
    def color_map(img):
        s = lax.reduce_window(
            img.astype(jnp.float32), 0.0, lax.add,
            window_dimensions=(1, 1, K, K),
            window_strides=(1, 1, 1, 1),
            padding=((0, 0), (0, 0), (P, P), (P, P)),
        )
        avg = s / float(K * K)
        return avg / jnp.sum(avg, axis=1, keepdims=True)

    d = color_map(image1) - color_map(image2)
    return jnp.mean(d * d)


if __name__ == "__main__":
    key = jax.random.PRNGKey(0)
    k1, k2 = jax.random.split(key)
    # Positive inputs (like images) so the channel-sum normalization is well-posed.
    img1 = jax.random.uniform(k1, (2, 4, 16, 16), dtype=jnp.float32, minval=0.1, maxval=1.0)
    img2 = jax.random.uniform(k2, (2, 4, 16, 16), dtype=jnp.float32, minval=0.1, maxval=1.0)

    loss = color_map_loss(img1, img2)
    jax.block_until_ready(loss)

    ref = _reference_loss(img1, img2)
    assert jnp.allclose(loss, ref, rtol=1e-3, atol=1e-6), (loss, ref)
    print("KERNEL_OK")
</pallas_src>

<mosaic_0001>
module attributes {stable_mosaic.version = 11 : i64} {
  func.func @_color_map_loss_kernel(%arg0: i32, %arg1: memref<1x4x16x16xf32, #tpu.memory_space<vmem>>, %arg2: memref<1x4x16x16xf32, #tpu.memory_space<vmem>>, %arg3: memref<1x1x128xf32, #tpu.memory_space<vmem>>) attributes {dimension_semantics = [#tpu.dimension_semantics<parallel>], iteration_bounds = array<i64: 2>, scalar_prefetch = 0 : i64, scratch_operands = 0 : i64, tpu.core_type = #tpu.core_type<tc>, window_params = [{transform_indices = @transform_0, window_bounds = array<i64: 1, 4, 16, 16>}, {transform_indices = @transform_1, window_bounds = array<i64: 1, 4, 16, 16>}, {transform_indices = @transform_2, window_bounds = array<i64: 1, 1, 128>}]} {
    %0 = tpu.iota {dimensions = array<i32: 0>} : vector<16x16xi32>
    %1 = tpu.iota {dimensions = array<i32: 1>} : vector<16x16xi32>
    %2 = arith.subi %0, %1 : vector<16x16xi32>
    %3 = math.absi %2 : vector<16x16xi32>
    %c5_i32 = arith.constant 5 : i32
    %4 = vector.broadcast %c5_i32 : i32 to vector<16x16xi32>
    %5 = arith.cmpi sle, %3, %4 : vector<16x16xi32>
    %6 = arith.extui %5 : vector<16x16xi1> to vector<16x16xi32>
    %7 = arith.sitofp %6 : vector<16x16xi32> to vector<16x16xf32>
    %8 = tpu.iota {dimensions = array<i32: 0>} : vector<16x16xi32>
    %9 = tpu.iota {dimensions = array<i32: 1>} : vector<16x16xi32>
    %10 = arith.subi %8, %9 : vector<16x16xi32>
    %11 = math.absi %10 : vector<16x16xi32>
    %c5_i32_0 = arith.constant 5 : i32
    %12 = vector.broadcast %c5_i32_0 : i32 to vector<16x16xi32>
    %13 = arith.cmpi sle, %11, %12 : vector<16x16xi32>
    %14 = arith.extui %13 : vector<16x16xi1> to vector<16x16xi32>
    %15 = arith.sitofp %14 : vector<16x16xi32> to vector<16x16xf32>
    %c0 = arith.constant 0 : index
    %c0_1 = arith.constant 0 : index
    %c0_2 = arith.constant 0 : index
    %c0_3 = arith.constant 0 : index
    %16 = vector.load %arg1[%c0, %c0_1, %c0_2, %c0_3] : memref<1x4x16x16xf32, #tpu.memory_space<vmem>>, vector<1x4x16x16xf32>
    %17 = vector.shape_cast %16 : vector<1x4x16x16xf32> to vector<4x16x16xf32>
    %18 = vector.shape_cast %17 : vector<4x16x16xf32> to vector<64x16xf32>
    %cst = arith.constant dense<0.000000e+00> : vector<64x16xf32>
    %19 = tpu.matmul %18, %7, %cst {dimension_numbers = #tpu.dot_dimension_numbers<[1], [0], [0], [1], [0, 0, 1, 1], [], []>} : vector<64x16xf32>, vector<16x16xf32>, vector<64x16xf32> -> vector<64x16xf32>
    %20 = vector.extract_strided_slice %19 {offsets = [0, 0], sizes = [16, 16], strides = [1, 1]} : vector<64x16xf32> to vector<16x16xf32>
    %21 = vector.extract_strided_slice %19 {offsets = [16, 0], sizes = [16, 16], strides = [1, 1]} : vector<64x16xf32> to vector<16x16xf32>
    %22 = vector.extract_strided_slice %19 {offsets = [32, 0], sizes = [16, 16], strides = [1, 1]} : vector<64x16xf32> to vector<16x16xf32>
    %23 = vector.extract_strided_slice %19 {offsets = [48, 0], sizes = [16, 16], strides = [1, 1]} : vector<64x16xf32> to vector<16x16xf32>
    %cst_4 = arith.constant dense<0.000000e+00> : vector<16x16xf32>
    %24 = tpu.matmul %15, %20, %cst_4 {dimension_numbers = #tpu.dot_dimension_numbers<[1], [0], [0], [1], [0, 0, 1, 1], [], []>} : vector<16x16xf32>, vector<16x16xf32>, vector<16x16xf32> -> vector<16x16xf32>
    %cst_5 = arith.constant dense<0.000000e+00> : vector<16x16xf32>
    %25 = tpu.matmul %15, %21, %cst_5 {dimension_numbers = #tpu.dot_dimension_numbers<[1], [0], [0], [1], [0, 0, 1, 1], [], []>} : vector<16x16xf32>, vector<16x16xf32>, vector<16x16xf32> -> vector<16x16xf32>
    %cst_6 = arith.constant dense<0.000000e+00> : vector<16x16xf32>
    %26 = tpu.matmul %15, %22, %cst_6 {dimension_numbers = #tpu.dot_dimension_numbers<[1], [0], [0], [1], [0, 0, 1, 1], [], []>} : vector<16x16xf32>, vector<16x16xf32>, vector<16x16xf32> -> vector<16x16xf32>
    %cst_7 = arith.constant dense<0.000000e+00> : vector<16x16xf32>
    %27 = tpu.matmul %15, %23, %cst_7 {dimension_numbers = #tpu.dot_dimension_numbers<[1], [0], [0], [1], [0, 0, 1, 1], [], []>} : vector<16x16xf32>, vector<16x16xf32>, vector<16x16xf32> -> vector<16x16xf32>
    %c0_8 = arith.constant 0 : index
    %c0_9 = arith.constant 0 : index
    %c0_10 = arith.constant 0 : index
    %c0_11 = arith.constant 0 : index
    %28 = vector.load %arg2[%c0_8, %c0_9, %c0_10, %c0_11] : memref<1x4x16x16xf32, #tpu.memory_space<vmem>>, vector<1x4x16x16xf32>
    %29 = vector.shape_cast %28 : vector<1x4x16x16xf32> to vector<4x16x16xf32>
    %30 = vector.shape_cast %29 : vector<4x16x16xf32> to vector<64x16xf32>
    %cst_12 = arith.constant dense<0.000000e+00> : vector<64x16xf32>
    %31 = tpu.matmul %30, %7, %cst_12 {dimension_numbers = #tpu.dot_dimension_numbers<[1], [0], [0], [1], [0, 0, 1, 1], [], []>} : vector<64x16xf32>, vector<16x16xf32>, vector<64x16xf32> -> vector<64x16xf32>
    %32 = vector.extract_strided_slice %31 {offsets = [0, 0], sizes = [16, 16], strides = [1, 1]} : vector<64x16xf32> to vector<16x16xf32>
    %33 = vector.extract_strided_slice %31 {offsets = [16, 0], sizes = [16, 16], strides = [1, 1]} : vector<64x16xf32> to vector<16x16xf32>
    %34 = vector.extract_strided_slice %31 {offsets = [32, 0], sizes = [16, 16], strides = [1, 1]} : vector<64x16xf32> to vector<16x16xf32>
    %35 = vector.extract_strided_slice %31 {offsets = [48, 0], sizes = [16, 16], strides = [1, 1]} : vector<64x16xf32> to vector<16x16xf32>
    %cst_13 = arith.constant dense<0.000000e+00> : vector<16x16xf32>
    %36 = tpu.matmul %15, %32, %cst_13 {dimension_numbers = #tpu.dot_dimension_numbers<[1], [0], [0], [1], [0, 0, 1, 1], [], []>} : vector<16x16xf32>, vector<16x16xf32>, vector<16x16xf32> -> vector<16x16xf32>
    %cst_14 = arith.constant dense<0.000000e+00> : vector<16x16xf32>
    %37 = tpu.matmul %15, %33, %cst_14 {dimension_numbers = #tpu.dot_dimension_numbers<[1], [0], [0], [1], [0, 0, 1, 1], [], []>} : vector<16x16xf32>, vector<16x16xf32>, vector<16x16xf32> -> vector<16x16xf32>
    %cst_15 = arith.constant dense<0.000000e+00> : vector<16x16xf32>
    %38 = tpu.matmul %15, %34, %cst_15 {dimension_numbers = #tpu.dot_dimension_numbers<[1], [0], [0], [1], [0, 0, 1, 1], [], []>} : vector<16x16xf32>, vector<16x16xf32>, vector<16x16xf32> -> vector<16x16xf32>
    %cst_16 = arith.constant dense<0.000000e+00> : vector<16x16xf32>
    %39 = tpu.matmul %15, %35, %cst_16 {dimension_numbers = #tpu.dot_dimension_numbers<[1], [0], [0], [1], [0, 0, 1, 1], [], []>} : vector<16x16xf32>, vector<16x16xf32>, vector<16x16xf32> -> vector<16x16xf32>
    %40 = arith.addf %24, %25 : vector<16x16xf32>
    %41 = arith.addf %36, %37 : vector<16x16xf32>
    %42 = arith.addf %40, %26 : vector<16x16xf32>
    %43 = arith.addf %41, %38 : vector<16x16xf32>
    %44 = arith.addf %42, %27 : vector<16x16xf32>
    %45 = arith.addf %43, %39 : vector<16x16xf32>
    %cst_17 = arith.constant 1.000000e+00 : f32
    %46 = vector.broadcast %cst_17 : f32 to vector<16x16xf32>
    %47 = arith.divf %46, %44 : vector<16x16xf32>
    %cst_18 = arith.constant 1.000000e+00 : f32
    %48 = vector.broadcast %cst_18 : f32 to vector<16x16xf32>
    %49 = arith.divf %48, %45 : vector<16x16xf32>
    %50 = arith.mulf %24, %47 : vector<16x16xf32>
    %51 = arith.mulf %36, %49 : vector<16x16xf32>
    %52 = arith.subf %50, %51 : vector<16x16xf32>
    %53 = arith.mulf %52, %52 : vector<16x16xf32>
    %54 = arith.mulf %25, %47 : vector<16x16xf32>
    %55 = arith.mulf %37, %49 : vector<16x16xf32>
    %56 = arith.subf %54, %55 : vector<16x16xf32>
    %57 = arith.mulf %56, %56 : vector<16x16xf32>
    %58 = arith.addf %53, %57 : vector<16x16xf32>
    %59 = arith.mulf %26, %47 : vector<16x16xf32>
    %60 = arith.mulf %38, %49 : vector<16x16xf32>
    %61 = arith.subf %59, %60 : vector<16x16xf32>
    %62 = arith.mulf %61, %61 : vector<16x16xf32>
    %63 = arith.addf %58, %62 : vector<16x16xf32>
    %64 = arith.mulf %27, %47 : vector<16x16xf32>
    %65 = arith.mulf %39, %49 : vector<16x16xf32>
    %66 = arith.subf %64, %65 : vector<16x16xf32>
    %67 = arith.mulf %66, %66 : vector<16x16xf32>
    %68 = arith.addf %63, %67 : vector<16x16xf32>
    %69 = vector.shape_cast %68 : vector<16x16xf32> to vector<1x16x16xf32>
    %cst_19 = arith.constant dense<0.000000e+00> : vector<1xf32>
    %70 = vector.multi_reduction <add>, %69, %cst_19 [1, 2] : vector<1x16x16xf32> to vector<1xf32>
    %71 = vector.shape_cast %70 : vector<1xf32> to vector<1x1x1xf32>
    %72 = vector.extract %71[0, 0, 0] : f32 from vector<1x1x1xf32>
    %73 = vector.broadcast %72 : f32 to vector<1x1x128xf32>
    %c0_20 = arith.constant 0 : index
    %c0_21 = arith.constant 0 : index
    %c0_22 = arith.constant 0 : index
    %74 = vector.load %arg3[%c0_20, %c0_21, %c0_22] : memref<1x1x128xf32, #tpu.memory_space<vmem>>, vector<1x1x128xf32>
    tpu.vector_store %arg3[%c0_20, %c0_21, %c0_22], %73 {strides = array<i32>} : memref<1x1x128xf32, #tpu.memory_space<vmem>>, vector<1x1x128xf32>,
    return
  }
  func.func @transform_0(%arg0: i32) -> (i32, i32, i32, i32) {
    %c0_i32 = arith.constant 0 : i32
    %c0_i32_0 = arith.constant 0 : i32
    %c0_i32_1 = arith.constant 0 : i32
    %c0_i32_2 = arith.constant 0 : i32
    return %arg0, %c0_i32, %c0_i32_0, %c0_i32_1 : i32, i32, i32, i32
  }
  func.func @transform_1(%arg0: i32) -> (i32, i32, i32, i32) {
    %c0_i32 = arith.constant 0 : i32
    %c0_i32_0 = arith.constant 0 : i32
    %c0_i32_1 = arith.constant 0 : i32
    %c0_i32_2 = arith.constant 0 : i32
    return %arg0, %c0_i32, %c0_i32_0, %c0_i32_1 : i32, i32, i32, i32
  }
  func.func @transform_2(%arg0: i32) -> (i32, i32, i32) {
    %c0_i32 = arith.constant 0 : i32
    %c0_i32_0 = arith.constant 0 : i32
    %c0_i32_1 = arith.constant 0 : i32
    return %arg0, %c0_i32, %c0_i32_0 : i32, i32, i32
  }
}

</mosaic_0001>

<llo_original>
// kernel: tpu_custom_call.1
$region0: #{tpu_custom_call.1}
  #allocation0 [shape = 'u32[]', space=smem, size = 0x4, offset = 0x4, fixed_abs, tag = 'smem constant byte address 0x4 - core index']
  #allocation1 [shape = 'u32[72,128]{1,0:T(1,128)}', space=vmem, size = 0x9000, scoped, tag = 'internal scratch']
  %s0 = inlined_call_operand.hbm [shape: f32[2,4,16,16], index: 0, kind: input, shape index: {}]
  %s1 = inlined_call_operand.hbm [shape: f32[2,4,16,16], index: 1, kind: input, shape index: {}]
  %s2 = inlined_call_operand.hbm [shape: f32[2,1,128], index: 2, kind: output, shape index: {}]
  %s3 = sld [smem:[#allocation0]]
  $region49: #{tpu_custom_call.1} parent=0
    _
  %s5 = ssub.s32 1, %s3
  %s6 = scalar_select 0, %s5, %s3
  $region1: #{tpu_custom_call.1} parent=0
    #allocation2 [shape = 'u8[65536]{0}', space=vmem, size = 0x10000, scoped, tag = 'input window, operand 0']
    #allocation3 [shape = 's32[2]{0}', space=sflag, size = 0x8, scoped, tag = 'scoped memory for tpu_custom_call.1']
    #allocation4 [shape = 's32[2]{0}', space=sflag, size = 0x8, scoped, tag = 'scoped memory for tpu_custom_call.1']
    #allocation5 [shape = 'u8[65536]{0}', space=vmem, size = 0x10000, scoped, tag = 'input window, operand 1']
    #allocation6 [shape = 's32[2]{0}', space=sflag, size = 0x8, scoped, tag = 'scoped memory for tpu_custom_call.1']
    #allocation7 [shape = 'u8[1024]{0}', space=vmem, size = 0x400, scoped, tag = 'output window, operand 0']
    %7 = vsyncpa [#allocation3], 0
    %s8 = scalar_lea.sflag [#allocation3], 1
    %9 = vsyncpa %s8, 0
    %10 = vsyncpa [#allocation6], 0
    %s11 = scalar_lea.sflag [#allocation6], 1
    %12 = vsyncpa %s11, 0
    %13 = vsyncpa [#allocation4], 0
    %s14 = scalar_lea.sflag [#allocation4], 1
    %15 = vsyncpa %s14, 0
    loop: start=0, step=1, limit=4
    $region2: #{tpu_custom_call.1} parent=1 // loop_pre_header
      _
    $region3: #{tpu_custom_call.1} parent=1 // loop_header
      %s17 = sphi 0, %s21
      %p18 = scmp.ge.s32.totalorder %s17, 4
      %s27 = sphi 0, %s29
      %s30 = sphi 0, %s27
      %s31 = sphi 0, %s30
      %s47 = sphi 0, %s31
      %s53 = sphi 0, %s55
      %s56 = sphi 0, %s53
      %s57 = sphi 0, %s56
      %s73 = sphi 0, %s57
      %s79 = sphi 0, %s81
      %s82 = sphi 0, %s79
      %s83 = sphi 0, %s82
      %s99 = sphi 0, %s83
    $region4: #{tpu_custom_call.1} parent=1 // loop_header_branch
      %20 = sbr.rel (%p18) target = $region8
    $region5: #{tpu_custom_call.1} parent=1 // loop_body
      %s22 = ssub.s32 %s17, 1
      %s23 = ssub.s32 %s17, 2
      %s24 = sadd.s32 %s17, 1
      %s25 = ssub.s32 %s17, %s24
      %p26 = scmp.eq.s32.totalorder %s25, 0
      %s28 = sadd.s32 %s27, 1
      %s29 = scalar_select %p26, %s27, %s28
      %p32 = pneg %p26
      %p33 = scmp.eq.s32.totalorder %s17, 1
      %p34 = por %p32, %p33
      %p35 = scmp.ne.s32.totalorder %s27, %s30
      %p36 = scmp.eq.s32.totalorder %s17, 0
      %p37 = por %p35, %p36
      %p38 = scmp.ne.s32.totalorder %s27, %s30
      %p39 = scmp.eq.s32.totalorder %s22, 1
      %p40 = por %p38, %p39
      %p41 = scmp.ne.s32.totalorder %s30, %s31
      %p42 = scmp.eq.s32.totalorder %s22, 0
      %p43 = por %p41, %p42
      %p44 = scmp.ne.s32.totalorder %s30, %s31
      %p45 = scmp.eq.s32.totalorder %s23, 1
      %p46 = por %p44, %p45
      %p48 = scmp.ne.s32.totalorder %s31, %s47
      %p49 = scmp.eq.s32.totalorder %s23, 0
      %p50 = por %p48, %p49
      %s51 = ssub.s32 %s17, %s24
      %p52 = scmp.eq.s32.totalorder %s51, 0
      %s54 = sadd.s32 %s53, 1
      %s55 = scalar_select %p52, %s53, %s54
      %p58 = pneg %p52
      %p59 = scmp.eq.s32.totalorder %s17, 1
      %p60 = por %p58, %p59
      %p61 = scmp.ne.s32.totalorder %s53, %s56
      %p62 = scmp.eq.s32.totalorder %s17, 0
      %p63 = por %p61, %p62
      %p64 = scmp.ne.s32.totalorder %s53, %s56
      %p65 = scmp.eq.s32.totalorder %s22, 1
      %p66 = por %p64, %p65
      %p67 = scmp.ne.s32.totalorder %s56, %s57
      %p68 = scmp.eq.s32.totalorder %s22, 0
      %p69 = por %p67, %p68
      %p70 = scmp.ne.s32.totalorder %s56, %s57
      %p71 = scmp.eq.s32.totalorder %s23, 1
      %p72 = por %p70, %p71
      %p74 = scmp.ne.s32.totalorder %s57, %s73
      %p75 = scmp.eq.s32.totalorder %s23, 0
      %p76 = por %p74, %p75
      %s77 = ssub.s32 %s17, %s24
      %p78 = scmp.eq.s32.totalorder %s77, 0
      %s80 = sadd.s32 %s79, 1
      %s81 = scalar_select %p78, %s79, %s80
      %p84 = pneg %p78
      %p85 = scmp.eq.s32.totalorder %s17, 1
      %p86 = por %p84, %p85
      %p87 = scmp.ne.s32.totalorder %s79, %s82
      %p88 = scmp.eq.s32.totalorder %s17, 0
      %p89 = por %p87, %p88
      %p90 = scmp.ne.s32.totalorder %s79, %s82
      %p91 = scmp.eq.s32.totalorder %s22, 1
      %p92 = por %p90, %p91
      %p93 = scmp.ne.s32.totalorder %s82, %s83
      %p94 = scmp.eq.s32.totalorder %s22, 0
      %p95 = por %p93, %p94
      %p96 = scmp.ne.s32.totalorder %s82, %s83
      %p97 = scmp.eq.s32.totalorder %s23, 1
      %p98 = por %p96, %p97
      %p100 = scmp.ne.s32.totalorder %s83, %s99
      %p101 = scmp.eq.s32.totalorder %s23, 0
      %p102 = por %p100, %p101
      %p103 = scmp.le.s32.totalorder 1, %s17
      %p104 = scmp.lt.s32.totalorder %s17, 3
      %p105 = pnand %p103, %p104
      %p106 = pneg %p105
      // Predicated region
      $region9: #{tpu_custom_call.1} parent=5 // pred_check
        _
      $region10: #{tpu_custom_call.1} parent=5 // pred_check_branch
        %108 = sbr.rel (%p105) target = $region12
      $region11: #{tpu_custom_call.1} parent=5 // pred_region
        %s109 = ssub.s32 %s17, 1
      $region12: #{tpu_custom_call.1} parent=5 // pred_fallthru
        _
      %p110 = scmp.lt.s32.totalorder %s17, 2
      // Predicated region
      $region13: #{tpu_custom_call.1} parent=5 // pred_check
        %p111 = pneg %p110
      $region14: #{tpu_custom_call.1} parent=5 // pred_check_branch
        %113 = sbr.rel (%p111) target = $region16
      $region15: #{tpu_custom_call.1} parent=5 // pred_region
        // Predicated region
        $region17: #{tpu_custom_call.1} parent=15 // pred_check
          %p114 = pneg %p37
        $region18: #{tpu_custom_call.1} parent=15 // pred_check_branch
          %116 = sbr.rel (%p114) target = $region20
        $region19: #{tpu_custom_call.1} parent=15 // pred_region
          %s117 = sand.u32 %s27, 1
          %s118 = scalar_lea.sflag [#allocation3], %s117
          %s119 = sand.u32 %s27, 1
          %s120 = smul.addr %s119, 64
          %s121 = scalar_lea.vmem [#allocation2], %s120
          %123 = vsyncadd %s118, 0
          %s124 = smul.addr %s17, 8
          %s125 = smul.addr %s124, 8
          %s126 = scalar_lea.hbm %s0, %s125
          %s127 = sshll.u32 %s126, 4
          %s128 = int_to_ptr.hbm [resolvable:$true] %s127
          %s129 = sshll.u32 %s121, 4
          %s130 = int_to_ptr.vmem [resolvable:$true] %s129
          %135 = dma.hbm_to_vmem [thread:$0]  %s128, 1024, %s130, %s118, 128, 128, 8
        $region20: #{tpu_custom_call.1} parent=15 // pred_fallthru
          _
        // Predicated region
        $region21: #{tpu_custom_call.1} parent=15 // pred_check
          %p136 = pneg %p63
        $region22: #{tpu_custom_call.1} parent=15 // pred_check_branch
          %138 = sbr.rel (%p136) target = $region24
        $region23: #{tpu_custom_call.1} parent=15 // pred_region
          %s139 = sand.u32 %s53, 1
          %s140 = scalar_lea.sflag [#allocation6], %s139
          %s141 = sand.u32 %s53, 1
          %s142 = smul.addr %s141, 64
          %s143 = scalar_lea.vmem [#allocation5], %s142
          %145 = vsyncadd %s140, 0
          %s146 = smul.addr %s17, 8
          %s147 = smul.addr %s146, 8
          %s148 = scalar_lea.hbm %s1, %s147
          %s149 = sshll.u32 %s148, 4
          %s150 = int_to_ptr.hbm [resolvable:$true] %s149
          %s151 = sshll.u32 %s143, 4
          %s152 = int_to_ptr.vmem [resolvable:$true] %s151
          %157 = dma.hbm_to_vmem [thread:$0]  %s150, 1024, %s152, %s140, 128, 128, 8
        $region24: #{tpu_custom_call.1} parent=15 // pred_fallthru
          _
      $region16: #{tpu_custom_call.1} parent=5 // pred_fallthru
        _
      %p158 = scmp.le.s32.totalorder 1, %s17
      %p159 = scmp.lt.s32.totalorder %s17, 3
      %p160 = pnand %p158, %p159
      %p161 = pneg %p160
      // Predicated region
      $region25: #{tpu_custom_call.1} parent=5 // pred_check
        _
      $region26: #{tpu_custom_call.1} parent=5 // pred_check_branch
        %163 = sbr.rel (%p160) target = $region28
      $region27: #{tpu_custom_call.1} parent=5 // pred_region
        %s164 = ssub.s32 %s17, 1
        %s165 = sand.u32 %s30, 1
        %s166 = scalar_lea.sflag [#allocation3], %s165
        %s167 = sand.u32 %s30, 1
        %s168 = smul.addr %s167, 64
        %s169 = scalar_lea.vmem [#allocation2], %s168
        // Predicated region
        $region29: #{tpu_custom_call.1} parent=27 // pred_check
          %p170 = pneg %p43
        $region30: #{tpu_custom_call.1} parent=27 // pred_check_branch
          %172 = sbr.rel (%p170) target = $region32
        $region31: #{tpu_custom_call.1} parent=27 // pred_region
          %174 = dma.done %s166, 1024
        $region32: #{tpu_custom_call.1} parent=27 // pred_fallthru
          _
        %s175 = sand.u32 %s56, 1
        %s176 = scalar_lea.sflag [#allocation6], %s175
        %s177 = sand.u32 %s56, 1
        %s178 = smul.addr %s177, 64
        %s179 = scalar_lea.vmem [#allocation5], %s178
        // Predicated region
        $region33: #{tpu_custom_call.1} parent=27 // pred_check
          %p180 = pneg %p69
        $region34: #{tpu_custom_call.1} parent=27 // pred_check_branch
          %182 = sbr.rel (%p180) target = $region36
        $region35: #{tpu_custom_call.1} parent=27 // pred_region
          %184 = dma.done %s176, 1024
        $region36: #{tpu_custom_call.1} parent=27 // pred_fallthru
          _
        %s185 = sand.u32 %s30, 1
        %s186 = scalar_lea.sflag [#allocation3], %s185
        %s187 = sand.u32 %s30, 1
        %s188 = smul.addr %s187, 64
        %s189 = scalar_lea.vmem [#allocation2], %s188
        %p190 = pneg %p43
        %p191 = pneg %p40
        %s192 = sand.u32 %s56, 1
        %s193 = scalar_lea.sflag [#allocation6], %s192
        %s194 = sand.u32 %s56, 1
        %s195 = smul.addr %s194, 64
        %s196 = scalar_lea.vmem [#allocation5], %s195
        %p197 = pneg %p69
        %p198 = pneg %p66
        %p199 = pneg %p95
        %p200 = pneg %p92
        %s201 = sand.u32 %s82, 1
        %s202 = scalar_lea.sflag [#allocation4], %s201
        %s203 = sand.u32 %s82, 1
        %s204 = scalar_lea.vmem [#allocation7], %s203
        %v205 = vlaneseq
        %v206 = vshrl.u32 %v205, 7
        %v207 = vadd.s32 %v206, 8
        %v208 = vlaneseq
        %v209 = vand.u32 %v208, 127
        %v210 = vsub.s32 %v206, %v209
        %v211 = vsub.s32 %v207, %v209
        %vm212 = vcmp.lt.s32.totalorder %v210, 0
        %v213 = vsub.s32 0, %v210
        %v214 = vsel %vm212, %v213, %v210
        %vm215 = vcmp.lt.s32.totalorder %v211, 0
        %v216 = vsub.s32 0, %v211
        %v217 = vsel %vm215, %v216, %v211
        %vm218 = vcmp.le.s32.totalorder %v214, 5
        %vm219 = vcmp.le.s32.totalorder %v217, 5
        %v220 = vsel %vm218, 1, 0
        %v221 = vsel %vm219, 1, 0
        %v222 = vcvt.s32.f32 %v220
        %v223 = vcvt.s32.f32 %v221
        %v224 = vld [vmem:[%s169] sm:$0xff]
        %v225 = vld [vmem:[%s169 + $0x8] sm:$0xff]
        %v226 = vld [vmem:[%s169 + $0x10] sm:$0xff]
        %v227 = vld [vmem:[%s169 + $0x18] sm:$0xff]
        %v228 = vld [vmem:[%s169 + $0x20] sm:$0xff]
        %v229 = vld [vmem:[%s169 + $0x28] sm:$0xff]
        %v230 = vld [vmem:[%s169 + $0x30] sm:$0xff]
        %v231 = vld [vmem:[%s169 + $0x38] sm:$0xff]
        %vm232 = vcmask 130048
        %v234 = vsel %vm232, %v224, 0
        %v237 = vsel %vm232, %v225, 0
        %v240 = vsel %vm232, %v226, 0
        %v243 = vsel %vm232, %v227, 0
        %v246 = vsel %vm232, %v228, 0
        %v249 = vsel %vm232, %v229, 0
        %v252 = vsel %vm232, %v230, 0
        %v255 = vsel %vm232, %v231, 0
        %257 = vmatpush.msra.mxu0 0.0
        %258 = vmatpush.msra.mxu0 0.0
        %259 = vmatpush.msra.mxu0 0.0
        %260 = vmatpush.msra.mxu0 0.0
        %261 = vmatpush.msra.mxu0 0.0
        %262 = vmatpush.msra.mxu0 0.0
        %263 = vmatpush.msra.mxu0 0.0
        %264 = vmatpush.msra.mxu0 0.0
        %265 = vmatpush.msra.mxu0 0.0
        %266 = vmatpush.msra.mxu0 0.0
        %267 = vmatpush.msra.mxu0 0.0
        %268 = vmatpush.msra.mxu0 0.0
        %269 = vmatpush.msra.mxu0 0.0
        %270 = vmatpush.msra.mxu0 0.0
        %271 = vmatpush.msra.mxu0 %v223
        %272 = vmatpush.msra.mxu0 %v222
        %273 = vmatmul.f32.gmra.mxu0 %v234
        %v274 = vpop.f32.mrf.mxu0
        %v275 = vadd.f32 0.0, %v274
        %276 = vmatmul.f32.gmra.mxu0 %v237
        %v277 = vpop.f32.mrf.mxu0
        %v278 = vadd.f32 0.0, %v277
        %279 = vmatmul.f32.gmra.mxu0 %v240
        %v280 = vpop.f32.mrf.mxu0
        %v281 = vadd.f32 0.0, %v280
        %282 = vmatmul.f32.gmra.mxu0 %v243
        %v283 = vpop.f32.mrf.mxu0
        %v284 = vadd.f32 0.0, %v283
        %285 = vmatmul.f32.gmra.mxu0 %v246
        %v286 = vpop.f32.mrf.mxu0
        %v287 = vadd.f32 0.0, %v286
        %288 = vmatmul.f32.gmra.mxu0 %v249
        %v289 = vpop.f32.mrf.mxu0
        %v290 = vadd.f32 0.0, %v289
        %291 = vmatmul.f32.gmra.mxu0 %v252
        %v292 = vpop.f32.mrf.mxu0
        %v293 = vadd.f32 0.0, %v292
        %294 = vmatmul.f32.gmra.mxu0 %v255
        %v295 = vpop.f32.mrf.mxu0
        %v296 = vadd.f32 0.0, %v295
        %297 = vdwg.mxu0
        %v299 = vsel %vm232, %v222, 0
        %v302 = vsel %vm232, %v223, 0
        %304 = vmatpush.msra.mxu0 0.0
        %305 = vmatpush.msra.mxu0 0.0
        %306 = vmatpush.msra.mxu0 0.0
        %307 = vmatpush.msra.mxu0 0.0
        %308 = vmatpush.msra.mxu0 0.0
        %309 = vmatpush.msra.mxu0 0.0
        %310 = vmatpush.msra.mxu0 0.0
        %311 = vmatpush.msra.mxu0 0.0
        %312 = vmatpush.msra.mxu0 0.0
        %313 = vmatpush.msra.mxu0 0.0
        %314 = vmatpush.msra.mxu0 0.0
        %315 = vmatpush.msra.mxu0 0.0
        %316 = vmatpush.msra.mxu0 0.0
        %317 = vmatpush.msra.mxu0 0.0
        %318 = vmatpush.msra.mxu0 %v278
        %319 = vmatpush.msra.mxu0 %v275
        %320 = vmatmul.f32.gmra.mxu0 %v299
        %v321 = vpop.f32.mrf.mxu0
        %v322 = vadd.f32 0.0, %v321
        %323 = vmatmul.f32.gmra.mxu0 %v302
        %v324 = vpop.f32.mrf.mxu0
        %v325 = vadd.f32 0.0, %v324
        %326 = vdwg.mxu0
        %327 = vmatpush.msra.mxu0 0.0
        %328 = vmatpush.msra.mxu0 0.0
        %329 = vmatpush.msra.mxu0 0.0
        %330 = vmatpush.msra.mxu0 0.0
        %331 = vmatpush.msra.mxu0 0.0
        %332 = vmatpush.msra.mxu0 0.0
        %333 = vmatpush.msra.mxu0 0.0
        %334 = vmatpush.msra.mxu0 0.0
        %335 = vmatpush.msra.mxu0 0.0
        %336 = vmatpush.msra.mxu0 0.0
        %337 = vmatpush.msra.mxu0 0.0
        %338 = vmatpush.msra.mxu0 0.0
        %339 = vmatpush.msra.mxu0 0.0
        %340 = vmatpush.msra.mxu0 0.0
        %341 = vmatpush.msra.mxu0 %v284
        %342 = vmatpush.msra.mxu0 %v281
        %343 = vmatmul.f32.gmra.mxu0 %v299
        %v344 = vpop.f32.mrf.mxu0
        %v345 = vadd.f32 0.0, %v344
        %346 = vmatmul.f32.gmra.mxu0 %v302
        %v347 = vpop.f32.mrf.mxu0
        %v348 = vadd.f32 0.0, %v347
        %349 = vdwg.mxu0
        %350 = vmatpush.msra.mxu0 0.0
        %351 = vmatpush.msra.mxu0 0.0
        %352 = vmatpush.msra.mxu0 0.0
        %353 = vmatpush.msra.mxu0 0.0
        %354 = vmatpush.msra.mxu0 0.0
        %355 = vmatpush.msra.mxu0 0.0
        %356 = vmatpush.msra.mxu0 0.0
        %357 = vmatpush.msra.mxu0 0.0
        %358 = vmatpush.msra.mxu0 0.0
        %359 = vmatpush.msra.mxu0 0.0
        %360 = vmatpush.msra.mxu0 0.0
        %361 = vmatpush.msra.mxu0 0.0
        %362 = vmatpush.msra.mxu0 0.0
        %363 = vmatpush.msra.mxu0 0.0
        %364 = vmatpush.msra.mxu0 %v290
        %365 = vmatpush.msra.mxu0 %v287
        %366 = vmatmul.f32.gmra.mxu0 %v299
        %v367 = vpop.f32.mrf.mxu0
        %v368 = vadd.f32 0.0, %v367
        %369 = vmatmul.f32.gmra.mxu0 %v302
        %v370 = vpop.f32.mrf.mxu0
        %v371 = vadd.f32 0.0, %v370
        %372 = vdwg.mxu0
        %373 = vmatpush.msra.mxu0 0.0
        %374 = vmatpush.msra.mxu0 0.0
        %375 = vmatpush.msra.mxu0 0.0
        %376 = vmatpush.msra.mxu0 0.0
        %377 = vmatpush.msra.mxu0 0.0
        %378 = vmatpush.msra.mxu0 0.0
        %379 = vmatpush.msra.mxu0 0.0
        %380 = vmatpush.msra.mxu0 0.0
        %381 = vmatpush.msra.mxu0 0.0
        %382 = vmatpush.msra.mxu0 0.0
        %383 = vmatpush.msra.mxu0 0.0
        %384 = vmatpush.msra.mxu0 0.0
        %385 = vmatpush.msra.mxu0 0.0
        %386 = vmatpush.msra.mxu0 0.0
        %387 = vmatpush.msra.mxu0 %v296
        %388 = vmatpush.msra.mxu0 %v293
        %389 = vmatmul.f32.gmra.mxu0 %v299
        %v390 = vpop.f32.mrf.mxu0
        %v391 = vadd.f32 0.0, %v390
        %392 = vmatmul.f32.gmra.mxu0 %v302
        %v393 = vpop.f32.mrf.mxu0
        %v394 = vadd.f32 0.0, %v393
        %395 = vdwg.mxu0
        %v396 = vld [vmem:[%s179] sm:$0xff]
        %v397 = vld [vmem:[%s179 + $0x8] sm:$0xff]
        %v398 = vld [vmem:[%s179 + $0x10] sm:$0xff]
        %v399 = vld [vmem:[%s179 + $0x18] sm:$0xff]
        %v400 = vld [vmem:[%s179 + $0x20] sm:$0xff]
        %v401 = vld [vmem:[%s179 + $0x28] sm:$0xff]
        %v402 = vld [vmem:[%s179 + $0x30] sm:$0xff]
        %v403 = vld [vmem:[%s179 + $0x38] sm:$0xff]
        %v405 = vsel %vm232, %v396, 0
        %v408 = vsel %vm232, %v397, 0
        %v411 = vsel %vm232, %v398, 0
        %v414 = vsel %vm232, %v399, 0
        %v417 = vsel %vm232, %v400, 0
        %v420 = vsel %vm232, %v401, 0
        %v423 = vsel %vm232, %v402, 0
        %v426 = vsel %vm232, %v403, 0
        %428 = vmatpush.msra.mxu0 0.0
        %429 = vmatpush.msra.mxu0 0.0
        %430 = vmatpush.msra.mxu0 0.0
        %431 = vmatpush.msra.mxu0 0.0
        %432 = vmatpush.msra.mxu0 0.0
        %433 = vmatpush.msra.mxu0 0.0
        %434 = vmatpush.msra.mxu0 0.0
        %435 = vmatpush.msra.mxu0 0.0
        %436 = vmatpush.msra.mxu0 0.0
        %437 = vmatpush.msra.mxu0 0.0
        %438 = vmatpush.msra.mxu0 0.0
        %439 = vmatpush.msra.mxu0 0.0
        %440 = vmatpush.msra.mxu0 0.0
        %441 = vmatpush.msra.mxu0 0.0
        %442 = vmatpush.msra.mxu0 %v223
        %443 = vmatpush.msra.mxu0 %v222
        %444 = vmatmul.f32.gmra.mxu0 %v405
        %v445 = vpop.f32.mrf.mxu0
        %v446 = vadd.f32 0.0, %v445
        %447 = vmatmul.f32.gmra.mxu0 %v408
        %v448 = vpop.f32.mrf.mxu0
        %v449 = vadd.f32 0.0, %v448
        %450 = vmatmul.f32.gmra.mxu0 %v411
        %v451 = vpop.f32.mrf.mxu0
        %v452 = vadd.f32 0.0, %v451
        %453 = vmatmul.f32.gmra.mxu0 %v414
        %v454 = vpop.f32.mrf.mxu0
        %v455 = vadd.f32 0.0, %v454
        %456 = vmatmul.f32.gmra.mxu0 %v417
        %v457 = vpop.f32.mrf.mxu0
        %v458 = vadd.f32 0.0, %v457
        %459 = vmatmul.f32.gmra.mxu0 %v420
        %v460 = vpop.f32.mrf.mxu0
        %v461 = vadd.f32 0.0, %v460
        %462 = vmatmul.f32.gmra.mxu0 %v423
        %v463 = vpop.f32.mrf.mxu0
        %v464 = vadd.f32 0.0, %v463
        %465 = vmatmul.f32.gmra.mxu0 %v426
        %v466 = vpop.f32.mrf.mxu0
        %v467 = vadd.f32 0.0, %v466
        %468 = vdwg.mxu0
        %469 = vmatpush.msra.mxu0 0.0
        %470 = vmatpush.msra.mxu0 0.0
        %471 = vmatpush.msra.mxu0 0.0
        %472 = vmatpush.msra.mxu0 0.0
        %473 = vmatpush.msra.mxu0 0.0
        %474 = vmatpush.msra.mxu0 0.0
        %475 = vmatpush.msra.mxu0 0.0
        %476 = vmatpush.msra.mxu0 0.0
        %477 = vmatpush.msra.mxu0 0.0
        %478 = vmatpush.msra.mxu0 0.0
        %479 = vmatpush.msra.mxu0 0.0
        %480 = vmatpush.msra.mxu0 0.0
        %481 = vmatpush.msra.mxu0 0.0
        %482 = vmatpush.msra.mxu0 0.0
        %483 = vmatpush.msra.mxu0 %v449
        %484 = vmatpush.msra.mxu0 %v446
        %485 = vmatmul.f32.gmra.mxu0 %v299
        %v486 = vpop.f32.mrf.mxu0
        %v487 = vadd.f32 0.0, %v486
        %488 = vmatmul.f32.gmra.mxu0 %v302
        %v489 = vpop.f32.mrf.mxu0
        %v490 = vadd.f32 0.0, %v489
        %491 = vdwg.mxu0
        %492 = vmatpush.msra.mxu0 0.0
        %493 = vmatpush.msra.mxu0 0.0
        %494 = vmatpush.msra.mxu0 0.0
        %495 = vmatpush.msra.mxu0 0.0
        %496 = vmatpush.msra.mxu0 0.0
        %497 = vmatpush.msra.mxu0 0.0
        %498 = vmatpush.msra.mxu0 0.0
        %499 = vmatpush.msra.mxu0 0.0
        %500 = vmatpush.msra.mxu0 0.0
        %501 = vmatpush.msra.mxu0 0.0
        %502 = vmatpush.msra.mxu0 0.0
        %503 = vmatpush.msra.mxu0 0.0
        %504 = vmatpush.msra.mxu0 0.0
        %505 = vmatpush.msra.mxu0 0.0
        %506 = vmatpush.msra.mxu0 %v455
        %507 = vmatpush.msra.mxu0 %v452
        %508 = vmatmul.f32.gmra.mxu0 %v299
        %v509 = vpop.f32.mrf.mxu0
        %v510 = vadd.f32 0.0, %v509
        %511 = vmatmul.f32.gmra.mxu0 %v302
        %v512 = vpop.f32.mrf.mxu0
        %v513 = vadd.f32 0.0, %v512
        %514 = vdwg.mxu0
        %515 = vmatpush.msra.mxu0 0.0
        %516 = vmatpush.msra.mxu0 0.0
        %517 = vmatpush.msra.mxu0 0.0
        %518 = vmatpush.msra.mxu0 0.0
        %519 = vmatpush.msra.mxu0 0.0
        %520 = vmatpush.msra.mxu0 0.0
        %521 = vmatpush.msra.mxu0 0.0
        %522 = vmatpush.msra.mxu0 0.0
        %523 = vmatpush.msra.mxu0 0.0
        %524 = vmatpush.msra.mxu0 0.0
        %525 = vmatpush.msra.mxu0 0.0
        %526 = vmatpush.msra.mxu0 0.0
        %527 = vmatpush.msra.mxu0 0.0
        %528 = vmatpush.msra.mxu0 0.0
        %529 = vmatpush.msra.mxu0 %v461
        %530 = vmatpush.msra.mxu0 %v458
        %531 = vmatmul.f32.gmra.mxu0 %v299
        %v532 = vpop.f32.mrf.mxu0
        %v533 = vadd.f32 0.0, %v532
        %534 = vmatmul.f32.gmra.mxu0 %v302
        %v535 = vpop.f32.mrf.mxu0
        %v536 = vadd.f32 0.0, %v535
        %537 = vdwg.mxu0
        %538 = vmatpush.msra.mxu0 0.0
        %539 = vmatpush.msra.mxu0 0.0
        %540 = vmatpush.msra.mxu0 0.0
        %541 = vmatpush.msra.mxu0 0.0
        %542 = vmatpush.msra.mxu0 0.0
        %543 = vmatpush.msra.mxu0 0.0
        %544 = vmatpush.msra.mxu0 0.0
        %545 = vmatpush.msra.mxu0 0.0
        %546 = vmatpush.msra.mxu0 0.0
        %547 = vmatpush.msra.mxu0 0.0
        %548 = vmatpush.msra.mxu0 0.0
        %549 = vmatpush.msra.mxu0 0.0
        %550 = vmatpush.msra.mxu0 0.0
        %551 = vmatpush.msra.mxu0 0.0
        %552 = vmatpush.msra.mxu0 %v467
        %553 = vmatpush.msra.mxu0 %v464
        %554 = vmatmul.f32.gmra.mxu0 %v299
        %v555 = vpop.f32.mrf.mxu0
        %v556 = vadd.f32 0.0, %v555
        %557 = vmatmul.f32.gmra.mxu0 %v302
        %v558 = vpop.f32.mrf.mxu0
        %v559 = vadd.f32 0.0, %v558
        %560 = vdwg.mxu0
        %v561 = vadd.f32 %v322, %v345
        %v562 = vadd.f32 %v325, %v348
        %v563 = vadd.f32 %v487, %v510
        %v564 = vadd.f32 %v490, %v513
        %v565 = vadd.f32 %v561, %v368
        %v566 = vadd.f32 %v562, %v371
        %v567 = vadd.f32 %v563, %v533
        %v568 = vadd.f32 %v564, %v536
        %v569 = vadd.f32 %v565, %v391
        %v570 = vadd.f32 %v566, %v394
        %v571 = vadd.f32 %v567, %v556
        %v572 = vadd.f32 %v568, %v559
        %v573 = vrcp.pop %v569
        %v574 = vmul.f32 %v569, %v573
        %v575 = vsub.f32 1.0, %v574
        %v576 = vmul.f32 %v573, %v575
        %v577 = vadd.f32 %v573, %v576
        %vm578 = vweird.f32 %v569
        %vm579 = vweird.f32 %v573
        %vm580 = vmor %vm578, %vm579
        %v581 = vsel %vm580, %v573, %v577
        %v582 = vand.u32 2147483647, %v569
        %vm583 = vcmp.eq.f32.partialorder %v582, 8.507059e+37
        %v584 = vand.u32 %v569, 2147483648
        %v585 = vor.u32 1.1754944e-38, %v584
        %v586 = vsel %vm583, %v585, %v581
        %v587 = vmul.f32 1.0, %v586
        %v588 = vrcp.pop %v570
        %v589 = vmul.f32 %v570, %v588
        %v590 = vsub.f32 1.0, %v589
        %v591 = vmul.f32 %v588, %v590
        %v592 = vadd.f32 %v588, %v591
        %vm593 = vweird.f32 %v570
        %vm594 = vweird.f32 %v588
        %vm595 = vmor %vm593, %vm594
        %v596 = vsel %vm595, %v588, %v592
        %v597 = vand.u32 2147483647, %v570
        %vm598 = vcmp.eq.f32.partialorder %v597, 8.507059e+37
        %v599 = vand.u32 %v570, 2147483648
        %v600 = vor.u32 1.1754944e-38, %v599
        %v601 = vsel %vm598, %v600, %v596
        %v602 = vmul.f32 1.0, %v601
        %v603 = vrcp.pop %v571
        %v604 = vmul.f32 %v571, %v603
        %v605 = vsub.f32 1.0, %v604
        %v606 = vmul.f32 %v603, %v605
        %v607 = vadd.f32 %v603, %v606
        %vm608 = vweird.f32 %v571
        %vm609 = vweird.f32 %v603
        %vm610 = vmor %vm608, %vm609
        %v611 = vsel %vm610, %v603, %v607
        %v612 = vand.u32 2147483647, %v571
        %vm613 = vcmp.eq.f32.partialorder %v612, 8.507059e+37
        %v614 = vand.u32 %v571, 2147483648
        %v615 = vor.u32 1.1754944e-38, %v614
        %v616 = vsel %vm613, %v615, %v611
        %v617 = vmul.f32 1.0, %v616
        %v618 = vrcp.pop %v572
        %v619 = vmul.f32 %v572, %v618
        %v620 = vsub.f32 1.0, %v619
        %v621 = vmul.f32 %v618, %v620
        %v622 = vadd.f32 %v618, %v621
        %vm623 = vweird.f32 %v572
        %vm624 = vweird.f32 %v618
        %vm625 = vmor %vm623, %vm624
        %v626 = vsel %vm625, %v618, %v622
        %v627 = vand.u32 2147483647, %v572
        %vm628 = vcmp.eq.f32.partialorder %v627, 8.507059e+37
        %v629 = vand.u32 %v572, 2147483648
        %v630 = vor.u32 1.1754944e-38, %v629
        %v631 = vsel %vm628, %v630, %v626
        %v632 = vmul.f32 1.0, %v631
        %v633 = vmul.f32 %v322, %v587
        %v634 = vmul.f32 %v325, %v602
        %v635 = vmul.f32 %v487, %v617
        %v636 = vmul.f32 %v490, %v632
        %v637 = vsub.f32 %v633, %v635
        %v638 = vsub.f32 %v634, %v636
        %v639 = vmul.f32 %v637, %v637
        %v640 = vmul.f32 %v638, %v638
        %v641 = vmul.f32 %v345, %v587
        %v642 = vmul.f32 %v348, %v602
        %v643 = vmul.f32 %v510, %v617
        %v644 = vmul.f32 %v513, %v632
        %v645 = vsub.f32 %v641, %v643
        %v646 = vsub.f32 %v642, %v644
        %v647 = vmul.f32 %v645, %v645
        %v648 = vmul.f32 %v646, %v646
        %v649 = vadd.f32 %v639, %v647
        %v650 = vadd.f32 %v640, %v648
        %v651 = vmul.f32 %v368, %v587
        %v652 = vmul.f32 %v371, %v602
        %v653 = vmul.f32 %v533, %v617
        %v654 = vmul.f32 %v536, %v632
        %v655 = vsub.f32 %v651, %v653
        %v656 = vsub.f32 %v652, %v654
        %v657 = vmul.f32 %v655, %v655
        %v658 = vmul.f32 %v656, %v656
        %v659 = vadd.f32 %v649, %v657
        %v660 = vadd.f32 %v650, %v658
        %v661 = vmul.f32 %v391, %v587
        %v662 = vmul.f32 %v394, %v602
        %v663 = vmul.f32 %v556, %v617
        %v664 = vmul.f32 %v559, %v632
        %v665 = vsub.f32 %v661, %v663
        %v666 = vsub.f32 %v662, %v664
        %v667 = vmul.f32 %v665, %v665
        %v668 = vmul.f32 %v666, %v666
        %v669 = vadd.f32 %v659, %v667
        %v670 = vadd.f32 %v660, %v668
        %v671 = vsel %vm232, %v669, 0.0
        %v672 = vsel %vm232, %v670, 0.0
        %v673 = vadd.f32 %v671, %v672
        %674 = vadd.xlane.f32.xlu0 %v673
        %v675 = vpop.xlane.xlu0 %674
        %v676 = vrot.slane %v675, 4
        %v677 = vadd.f32 %v675, %v676
        %v678 = vrot.slane %v677, 2
        %v679 = vadd.f32 %v677, %v678
        %v680 = vrot.slane %v679, 1
        %v681 = vadd.f32 %v679, %v680
        %s682 = vtos %v681
        %v683 = vstv %s682
        %684 = vst [vmem:[%s204] sm:$0x1] %v683
        %s685 = sand.u32 %s82, 1
        %s686 = scalar_lea.sflag [#allocation4], %s685
        %s687 = sand.u32 %s82, 1
        %s688 = scalar_lea.vmem [#allocation7], %s687
        // Predicated region
        $region37: #{tpu_custom_call.1} parent=27 // pred_check
          %p689 = pneg %p92
        $region38: #{tpu_custom_call.1} parent=27 // pred_check_branch
          %691 = sbr.rel (%p689) target = $region40
        $region39: #{tpu_custom_call.1} parent=27 // pred_region
          %693 = vsyncadd %s686, 0
          %s694 = scalar_lea.hbm %s2, %s22
          %s696 = sshll.u32 %s688, 4
          %s697 = int_to_ptr.vmem [resolvable:$true] %s696
          %s698 = sshll.u32 %s694, 4
          %s699 = int_to_ptr.hbm [resolvable:$true] %s698
          %701 = dma.vmem_to_hbm [thread:$0]  %s697, 16, %s699, %s686
        $region40: #{tpu_custom_call.1} parent=27 // pred_fallthru
          _
      $region28: #{tpu_custom_call.1} parent=5 // pred_fallthru
        _
      %p702 = scmp.le.s32.totalorder 2, %s17
      // Predicated region
      $region41: #{tpu_custom_call.1} parent=5 // pred_check
        %p703 = pneg %p702
      $region42: #{tpu_custom_call.1} parent=5 // pred_check_branch
        %705 = sbr.rel (%p703) target = $region44
      $region43: #{tpu_custom_call.1} parent=5 // pred_region
        %s706 = ssub.s32 %s17, 2
        // Predicated region
        $region45: #{tpu_custom_call.1} parent=43 // pred_check
          %p707 = pneg %p98
        $region46: #{tpu_custom_call.1} parent=43 // pred_check_branch
          %709 = sbr.rel (%p707) target = $region48
        $region47: #{tpu_custom_call.1} parent=43 // pred_region
          %s710 = sand.u32 %s83, 1
          %s711 = scalar_lea.sflag [#allocation4], %s710
          %s712 = sand.u32 %s83, 1
          %s713 = scalar_lea.vmem [#allocation7], %s712
          %715 = dma.done %s711, 16
        $region48: #{tpu_custom_call.1} parent=43 // pred_fallthru
          _
      $region44: #{tpu_custom_call.1} parent=5 // pred_fallthru
        _
    $region6: #{tpu_custom_call.1} parent=1 // loop_footer
      %s21 = sadd.s32 1, %s17
    $region7: #{tpu_custom_call.1} parent=1 // loop_footer_branch
      %16 = sbr.rel target = $region3
    $region8: #{tpu_custom_call.1} parent=1 // loop_exit
      _
    %716 = vsyncpa [#allocation3], 1
    %s717 = scalar_lea.sflag [#allocation3], 1
    %718 = vsyncpa %s717, 1
    %719 = vsyncpa [#allocation6], 1
    %s720 = scalar_lea.sflag [#allocation6], 1
    %721 = vsyncpa %s720, 1
    %722 = vsyncpa [#allocation4], 1
    %s723 = scalar_lea.sflag [#allocation4], 1
    %724 = vsyncpa %s723, 1

</llo_original>
